<compile_context>
chip_gen: v6e
topology: v6e:2x2x1
jax: 0.10.0
libtpu: 0.0.40
codegen_flags: <defaults>
</compile_context>

<pallas_src>
import functools

import jax
import jax.numpy as jnp
import numpy as np
from jax.experimental import pallas as pl
from jax.experimental.pallas import tpu as pltpu


def _focal_loss_kernel(alpha_ref, x_ref, t_ref, o_ref, *, gamma, num_classes):
    j = pl.program_id(1)  # pixel-tile (reduction) axis

    @pl.when(j == 0)
    def _():
        o_ref[...] = jnp.zeros(o_ref.shape, o_ref.dtype)

    C = num_classes
    t = t_ref[0, 0]                                    # (R, 128) integer targets

    # Running max over classes: short unrolled chain of full-width (R, 128) maxima.
    m = x_ref[0, 0].astype(jnp.float32)
    for c in range(1, C):
        m = jnp.maximum(m, x_ref[0, c].astype(jnp.float32))

    s = jnp.zeros_like(m)          # sum_c exp(z_c)
    z_t = jnp.zeros_like(m)        # shifted logit at the target class
    e_t = jnp.zeros_like(m)        # exp(z) at the target class (reused for pt)
    a_t = jnp.zeros_like(m)        # alpha[target]
    for c in range(C):
        z_c = x_ref[0, c].astype(jnp.float32) - m
        e_c = jnp.exp(z_c)
        s = s + e_c
        is_c = t == c
        z_t = jnp.where(is_c, z_c, z_t)
        e_t = jnp.where(is_c, e_c, e_t)
        a_t = jnp.where(is_c, alpha_ref[c], a_t)       # scalar splat from SMEM

    # Exact cross-entropy: ce = logsumexp - z_t; clamp >= 0 guards rounding only.
    ce = jnp.maximum(jnp.log(s) - z_t, 0.0)
    # pt = softmax prob at the target, built from the loop exps (no extra exp(-ce)).
    # approx=False keeps pt f32-exact; flip to approx=True if ~1e-3 weight error is OK.
    pt = e_t * pl.reciprocal(s, approx=False)
    omp = jnp.maximum(1.0 - pt, 0.0)

    g = float(gamma)
    if g == 2.0:
        w = omp * omp                                   # VPU multiply, no pow
    elif g == 0.0:
        w = jnp.ones_like(omp)
    elif g.is_integer() and 0.0 < g <= 8.0:
        w = omp
        for _ in range(int(g) - 1):
            w = w * omp
    else:
        w = jnp.power(omp, g)

    # Output block doubles as the per-image resident f32 accumulator.
    o_ref[0] = o_ref[0] + a_t * w * ce


def _round_up(x, m):
    return ((x + m - 1) // m) * m


def focal_loss(inputs_nchw, targets_nhw, alpha, gamma=2, *,
               max_tile_rows=512, target_block_bytes=2 << 20):
    """inputs_nchw: (N, C, H, W) float logits; targets_nhw: (N, H, W) int labels;
    alpha: (C,) per-class weights.  Returns the scalar mean focal loss."""
    N, C, H, W = inputs_nchw.shape
    P = H * W
    total_px = N * P

    # Keep targets in their (narrow) source dtype; only widen when necessary.
    tgt = targets_nhw
    if (not jnp.issubdtype(tgt.dtype, jnp.integer)) or jnp.dtype(tgt.dtype).itemsize > 4:
        tgt = tgt.astype(jnp.int32)

    # Pixel tiling: rows of 128 lanes; R a multiple of 32 covers f32/bf16 logits and
    # int32/int8 targets sublane tiling.  Target ~2 MiB of logits+targets per step.
    ALIGN = 32
    rows = -(-P // 128)
    bytes_per_row = 128 * (C * jnp.dtype(inputs_nchw.dtype).itemsize
                           + jnp.dtype(tgt.dtype).itemsize)
    r = int(target_block_bytes // bytes_per_row)
    r = max(ALIGN, (r // ALIGN) * ALIGN)
    tile_rows = min(r, max_tile_rows, _round_up(rows, ALIGN))
    padded_rows = _round_up(rows, tile_rows)
    num_p_tiles = padded_rows // tile_rows
    padded_P = padded_rows * 128

    # Free class-major view of NCHW (no transpose pass); pad pixels only if needed.
    x = inputs_nchw.reshape(N, C, P)
    t = tgt.reshape(N, 1, P)
    if padded_P != P:
        # Padded pixels get target == C -> no class matches -> zero contribution.
        x = jnp.pad(x, ((0, 0), (0, 0), (0, padded_P - P)))
        t = jnp.pad(t, ((0, 0), (0, 0), (0, padded_P - P)), constant_values=C)
    x = x.reshape(N, C, padded_rows, 128)
    t = t.reshape(N, 1, padded_rows, 128)
    a = jnp.asarray(alpha, dtype=jnp.float32).reshape(C)

    kernel = functools.partial(_focal_loss_kernel, gamma=gamma, num_classes=C)

    partial_sums = pl.pallas_call(
        kernel,
        out_shape=jax.ShapeDtypeStruct((N, tile_rows, 128), jnp.float32),
        grid_spec=pltpu.PrefetchScalarGridSpec(
            num_scalar_prefetch=1,          # alpha -> SMEM, read as scalars in-kernel
            grid=(N, num_p_tiles),
            in_specs=[
                pl.BlockSpec((1, C, tile_rows, 128), lambda i, j, a: (i, 0, j, 0)),
                pl.BlockSpec((1, 1, tile_rows, 128), lambda i, j, a: (i, 0, j, 0)),
            ],
            out_specs=pl.BlockSpec((1, tile_rows, 128), lambda i, j, a: (i, 0, 0)),
        ),
        compiler_params=pltpu.CompilerParams(
            # Batch axis parallel (uses both TensorCores on v7x); pixel-tile axis is
            # the resident-accumulator reduction.
            dimension_semantics=("parallel", "arbitrary"),
        ),
    )(a, x, t)

    # Tiny final reduction + mean over the *true* pixel count (padding contributes 0).
    return jnp.sum(partial_sums) / jnp.float32(total_px)


def focal_loss_ref(inputs_nchw, targets_nhw, alpha, gamma=2):
    """Pure-JAX reference mirroring the PyTorch module."""
    N, C, H, W = inputs_nchw.shape
    x = jnp.transpose(inputs_nchw, (0, 2, 3, 1)).reshape(-1, C).astype(jnp.float32)
    t = targets_nhw.reshape(-1).astype(jnp.int32)
    logp = jax.nn.log_softmax(x, axis=-1)
    ce = -jnp.take_along_axis(logp, t[:, None], axis=-1)[:, 0]
    pt = jnp.exp(-ce)
    return jnp.mean(alpha[t] * (1.0 - pt) ** gamma * ce)


if __name__ == "__main__":
    key = jax.random.PRNGKey(0)
    k1, k2 = jax.random.split(key)

    N, C, H, W = 2, 4, 16, 16
    inputs = jax.random.normal(k1, (N, C, H, W), dtype=jnp.float32)
    targets = jax.random.randint(k2, (N, H, W), 0, C, dtype=jnp.int32)
    alpha = jnp.array([0.25, 0.5, 0.75, 1.0], dtype=jnp.float32)
    gamma = 2

    loss = jax.block_until_ready(focal_loss(inputs, targets, alpha, gamma=gamma))
    ref = jax.block_until_ready(focal_loss_ref(inputs, targets, alpha, gamma=gamma))
    np.testing.assert_allclose(np.asarray(loss), np.asarray(ref), rtol=2e-5, atol=1e-6)

    print("KERNEL_OK")
</pallas_src>

<mosaic_0001>
module attributes {stable_mosaic.version = 11 : i64} {
  func.func @_focal_loss_kernel(%arg0: i32, %arg1: i32, %arg2: memref<4xf32, #tpu.memory_space<smem>>, %arg3: memref<1x4x32x128xf32, #tpu.memory_space<vmem>>, %arg4: memref<1x1x32x128xi32, #tpu.memory_space<vmem>>, %arg5: memref<1x32x128xf32, #tpu.memory_space<vmem>>) attributes {dimension_semantics = [#tpu.dimension_semantics<parallel>, #tpu.dimension_semantics<arbitrary>], iteration_bounds = array<i64: 2, 1>, scalar_prefetch = 1 : i64, scratch_operands = 0 : i64, tpu.core_type = #tpu.core_type<tc>, window_params = [{transform_indices = @transform_0, window_bounds = array<i64: 1, 4, 32, 128>}, {transform_indices = @transform_1, window_bounds = array<i64: 1, 1, 32, 128>}, {transform_indices = @transform_2, window_bounds = array<i64: 1, 32, 128>}]} {
    %c0_i32 = arith.constant 0 : i32
    %0 = arith.cmpi eq, %arg1, %c0_i32 : i32
    %1 = arith.extui %0 : i1 to i32
    %c0_i32_0 = arith.constant 0 : i32
    %2 = arith.cmpi ne, %1, %c0_i32_0 : i32
    scf.if %2 {
      %cst_50 = arith.constant 0.000000e+00 : f32
      %87 = vector.broadcast %cst_50 : f32 to vector<1x32x128xf32>
      %c0_51 = arith.constant 0 : index
      %c0_52 = arith.constant 0 : index
      %c0_53 = arith.constant 0 : index
      %88 = vector.load %arg5[%c0_51, %c0_52, %c0_53] : memref<1x32x128xf32, #tpu.memory_space<vmem>>, vector<1x32x128xf32>
      tpu.vector_store %arg5[%c0_51, %c0_52, %c0_53], %87 {strides = array<i32>} : memref<1x32x128xf32, #tpu.memory_space<vmem>>, vector<1x32x128xf32>,
    } else {
    }
    %c0 = arith.constant 0 : index
    %c0_1 = arith.constant 0 : index
    %c0_2 = arith.constant 0 : index
    %c0_3 = arith.constant 0 : index
    %3 = vector.load %arg4[%c0, %c0_1, %c0_2, %c0_3] : memref<1x1x32x128xi32, #tpu.memory_space<vmem>>, vector<1x1x32x128xi32>
    %4 = vector.shape_cast %3 : vector<1x1x32x128xi32> to vector<32x128xi32>
    %c0_4 = arith.constant 0 : index
    %c0_5 = arith.constant 0 : index
    %c0_6 = arith.constant 0 : index
    %c0_7 = arith.constant 0 : index
    %5 = vector.load %arg3[%c0_4, %c0_5, %c0_6, %c0_7] : memref<1x4x32x128xf32, #tpu.memory_space<vmem>>, vector<1x1x32x128xf32>
    %6 = vector.shape_cast %5 : vector<1x1x32x128xf32> to vector<32x128xf32>
    %c0_8 = arith.constant 0 : index
    %c1 = arith.constant 1 : index
    %c0_9 = arith.constant 0 : index
    %c0_10 = arith.constant 0 : index
    %7 = vector.load %arg3[%c0_8, %c1, %c0_9, %c0_10] : memref<1x4x32x128xf32, #tpu.memory_space<vmem>>, vector<1x1x32x128xf32>
    %8 = vector.shape_cast %7 : vector<1x1x32x128xf32> to vector<32x128xf32>
    %9 = arith.maximumf %6, %8 : vector<32x128xf32>
    %c0_11 = arith.constant 0 : index
    %c2 = arith.constant 2 : index
    %c0_12 = arith.constant 0 : index
    %c0_13 = arith.constant 0 : index
    %10 = vector.load %arg3[%c0_11, %c2, %c0_12, %c0_13] : memref<1x4x32x128xf32, #tpu.memory_space<vmem>>, vector<1x1x32x128xf32>
    %11 = vector.shape_cast %10 : vector<1x1x32x128xf32> to vector<32x128xf32>
    %12 = arith.maximumf %9, %11 : vector<32x128xf32>
    %c0_14 = arith.constant 0 : index
    %c3 = arith.constant 3 : index
    %c0_15 = arith.constant 0 : index
    %c0_16 = arith.constant 0 : index
    %13 = vector.load %arg3[%c0_14, %c3, %c0_15, %c0_16] : memref<1x4x32x128xf32, #tpu.memory_space<vmem>>, vector<1x1x32x128xf32>
    %14 = vector.shape_cast %13 : vector<1x1x32x128xf32> to vector<32x128xf32>
    %15 = arith.maximumf %12, %14 : vector<32x128xf32>
    %cst = arith.constant 0.000000e+00 : f32
    %16 = vector.broadcast %cst : f32 to vector<32x128xf32>
    %cst_17 = arith.constant 0.000000e+00 : f32
    %17 = vector.broadcast %cst_17 : f32 to vector<32x128xf32>
    %cst_18 = arith.constant 0.000000e+00 : f32
    %18 = vector.broadcast %cst_18 : f32 to vector<32x128xf32>
    %cst_19 = arith.constant 0.000000e+00 : f32
    %19 = vector.broadcast %cst_19 : f32 to vector<32x128xf32>
    %c0_20 = arith.constant 0 : index
    %c0_21 = arith.constant 0 : index
    %c0_22 = arith.constant 0 : index
    %c0_23 = arith.constant 0 : index
    %20 = vector.load %arg3[%c0_20, %c0_21, %c0_22, %c0_23] : memref<1x4x32x128xf32, #tpu.memory_space<vmem>>, vector<1x1x32x128xf32>
    %21 = vector.shape_cast %20 : vector<1x1x32x128xf32> to vector<32x128xf32>
    %22 = arith.subf %21, %15 : vector<32x128xf32>
    %23 = math.exp %22 : vector<32x128xf32>
    %24 = arith.addf %16, %23 : vector<32x128xf32>
    %c0_i32_24 = arith.constant 0 : i32
    %25 = vector.broadcast %c0_i32_24 : i32 to vector<32x128xi32>
    %26 = arith.cmpi eq, %4, %25 : vector<32x128xi32>
    %27 = arith.select %26, %22, %17 : vector<32x128xi1>, vector<32x128xf32>
    %28 = arith.select %26, %23, %18 : vector<32x128xi1>, vector<32x128xf32>
    %c0_25 = arith.constant 0 : index
    %29 = memref.load %arg2[%c0_25] : memref<4xf32, #tpu.memory_space<smem>>
    %30 = vector.broadcast %29 : f32 to vector<32x128xf32>
    %31 = arith.select %26, %30, %19 : vector<32x128xi1>, vector<32x128xf32>
    %c0_26 = arith.constant 0 : index
    %c1_27 = arith.constant 1 : index
    %c0_28 = arith.constant 0 : index
    %c0_29 = arith.constant 0 : index
    %32 = vector.load %arg3[%c0_26, %c1_27, %c0_28, %c0_29] : memref<1x4x32x128xf32, #tpu.memory_space<vmem>>, vector<1x1x32x128xf32>
    %33 = vector.shape_cast %32 : vector<1x1x32x128xf32> to vector<32x128xf32>
    %34 = arith.subf %33, %15 : vector<32x128xf32>
    %35 = math.exp %34 : vector<32x128xf32>
    %36 = arith.addf %24, %35 : vector<32x128xf32>
    %c1_i32 = arith.constant 1 : i32
    %37 = vector.broadcast %c1_i32 : i32 to vector<32x128xi32>
    %38 = arith.cmpi eq, %4, %37 : vector<32x128xi32>
    %39 = arith.select %38, %34, %27 : vector<32x128xi1>, vector<32x128xf32>
    %40 = arith.select %38, %35, %28 : vector<32x128xi1>, vector<32x128xf32>
    %c1_30 = arith.constant 1 : index
    %41 = memref.load %arg2[%c1_30] : memref<4xf32, #tpu.memory_space<smem>>
    %42 = vector.broadcast %41 : f32 to vector<32x128xf32>
    %43 = arith.select %38, %42, %31 : vector<32x128xi1>, vector<32x128xf32>
    %c0_31 = arith.constant 0 : index
    %c2_32 = arith.constant 2 : index
    %c0_33 = arith.constant 0 : index
    %c0_34 = arith.constant 0 : index
    %44 = vector.load %arg3[%c0_31, %c2_32, %c0_33, %c0_34] : memref<1x4x32x128xf32, #tpu.memory_space<vmem>>, vector<1x1x32x128xf32>
    %45 = vector.shape_cast %44 : vector<1x1x32x128xf32> to vector<32x128xf32>
    %46 = arith.subf %45, %15 : vector<32x128xf32>
    %47 = math.exp %46 : vector<32x128xf32>
    %48 = arith.addf %36, %47 : vector<32x128xf32>
    %c2_i32 = arith.constant 2 : i32
    %49 = vector.broadcast %c2_i32 : i32 to vector<32x128xi32>
    %50 = arith.cmpi eq, %4, %49 : vector<32x128xi32>
    %51 = arith.select %50, %46, %39 : vector<32x128xi1>, vector<32x128xf32>
    %52 = arith.select %50, %47, %40 : vector<32x128xi1>, vector<32x128xf32>
    %c2_35 = arith.constant 2 : index
    %53 = memref.load %arg2[%c2_35] : memref<4xf32, #tpu.memory_space<smem>>
    %54 = vector.broadcast %53 : f32 to vector<32x128xf32>
    %55 = arith.select %50, %54, %43 : vector<32x128xi1>, vector<32x128xf32>
    %c0_36 = arith.constant 0 : index
    %c3_37 = arith.constant 3 : index
    %c0_38 = arith.constant 0 : index
    %c0_39 = arith.constant 0 : index
    %56 = vector.load %arg3[%c0_36, %c3_37, %c0_38, %c0_39] : memref<1x4x32x128xf32, #tpu.memory_space<vmem>>, vector<1x1x32x128xf32>
    %57 = vector.shape_cast %56 : vector<1x1x32x128xf32> to vector<32x128xf32>
    %58 = arith.subf %57, %15 : vector<32x128xf32>
    %59 = math.exp %58 : vector<32x128xf32>
    %60 = arith.addf %48, %59 : vector<32x128xf32>
    %c3_i32 = arith.constant 3 : i32
    %61 = vector.broadcast %c3_i32 : i32 to vector<32x128xi32>
    %62 = arith.cmpi eq, %4, %61 : vector<32x128xi32>
    %63 = arith.select %62, %58, %51 : vector<32x128xi1>, vector<32x128xf32>
    %64 = arith.select %62, %59, %52 : vector<32x128xi1>, vector<32x128xf32>
    %c3_40 = arith.constant 3 : index
    %65 = memref.load %arg2[%c3_40] : memref<4xf32, #tpu.memory_space<smem>>
    %66 = vector.broadcast %65 : f32 to vector<32x128xf32>
    %67 = arith.select %62, %66, %55 : vector<32x128xi1>, vector<32x128xf32>
    %68 = math.log %60 : vector<32x128xf32>
    %69 = arith.subf %68, %63 : vector<32x128xf32>
    %cst_41 = arith.constant 0.000000e+00 : f32
    %70 = vector.broadcast %cst_41 : f32 to vector<32x128xf32>
    %71 = arith.maximumf %69, %70 : vector<32x128xf32>
    %72 = tpu.reciprocal %60 : vector<32x128xf32> -> vector<32x128xf32>
    %73 = arith.mulf %64, %72 : vector<32x128xf32>
    %cst_42 = arith.constant 1.000000e+00 : f32
    %74 = vector.broadcast %cst_42 : f32 to vector<32x128xf32>
    %75 = arith.subf %74, %73 : vector<32x128xf32>
    %cst_43 = arith.constant 0.000000e+00 : f32
    %76 = vector.broadcast %cst_43 : f32 to vector<32x128xf32>
    %77 = arith.maximumf %75, %76 : vector<32x128xf32>
    %78 = arith.mulf %77, %77 : vector<32x128xf32>
    %c0_44 = arith.constant 0 : index
    %c0_45 = arith.constant 0 : index
    %c0_46 = arith.constant 0 : index
    %79 = vector.load %arg5[%c0_44, %c0_45, %c0_46] : memref<1x32x128xf32, #tpu.memory_space<vmem>>, vector<1x32x128xf32>
    %80 = vector.shape_cast %79 : vector<1x32x128xf32> to vector<32x128xf32>
    %81 = arith.mulf %67, %78 : vector<32x128xf32>
    %82 = arith.mulf %81, %71 : vector<32x128xf32>
    %83 = arith.addf %80, %82 : vector<32x128xf32>
    %c0_47 = arith.constant 0 : index
    %c0_48 = arith.constant 0 : index
    %c0_49 = arith.constant 0 : index
    %84 = vector.load %arg5[%c0_47, %c0_48, %c0_49] : memref<1x32x128xf32, #tpu.memory_space<vmem>>, vector<1x32x128xf32>
    %85 = vector.shape_cast %84 : vector<1x32x128xf32> to vector<32x128xf32>
    %86 = vector.shape_cast %83 : vector<32x128xf32> to vector<1x32x128xf32>
    tpu.vector_store %arg5[%c0_47, %c0_48, %c0_49], %86 {strides = array<i32>} : memref<1x32x128xf32, #tpu.memory_space<vmem>>, vector<1x32x128xf32>,
    return
  }
  func.func @transform_0(%arg0: i32, %arg1: i32, %arg2: memref<4xf32, #tpu.memory_space<smem>>) -> (i32, i32, i32, i32) {
    %c0_i32 = arith.constant 0 : i32
    %c0_i32_0 = arith.constant 0 : i32
    %c0_i32_1 = arith.constant 0 : i32
    return %arg0, %c0_i32, %arg1, %c0_i32_0 : i32, i32, i32, i32
  }
  func.func @transform_1(%arg0: i32, %arg1: i32, %arg2: memref<4xf32, #tpu.memory_space<smem>>) -> (i32, i32, i32, i32) {
    %c0_i32 = arith.constant 0 : i32
    %c0_i32_0 = arith.constant 0 : i32
    %c0_i32_1 = arith.constant 0 : i32
    return %arg0, %c0_i32, %arg1, %c0_i32_0 : i32, i32, i32, i32
  }
  func.func @transform_2(%arg0: i32, %arg1: i32, %arg2: memref<4xf32, #tpu.memory_space<smem>>) -> (i32, i32, i32) {
    %c0_i32 = arith.constant 0 : i32
    %c0_i32_0 = arith.constant 0 : i32
    %c0_i32_1 = arith.constant 0 : i32
    return %arg0, %c0_i32, %c0_i32_0 : i32, i32, i32
  }
}

</mosaic_0001>

<llo_original>
// kernel: tpu_custom_call.1
$region0: #{tpu_custom_call.1}
  #allocation0 [shape = 'u32[]', space=smem, size = 0x4, offset = 0x4, fixed_abs, tag = 'smem constant byte address 0x4 - core index']
  #allocation1 [shape = 'u32[144,128]{1,0:T(1,128)}', space=vmem, size = 0x12000, scoped, tag = 'internal scratch']
  #allocation2 [shape = 's32[1]{0}', space=sflag, size = 0x4, scoped, tag = 'scoped memory for tpu_custom_call.1']
  #allocation3 [shape = 'u8[512]{0}', space=smem, size = 0x200, scoped, tag = 'prefetched SMEM operand 0']
  %s0 = inlined_call_operand.hbm [shape: f32[4], index: 0, kind: input, shape index: {}]
  %s1 = inlined_call_operand.hbm [shape: f32[2,4,32,128], index: 1, kind: input, shape index: {}]
  %s2 = inlined_call_operand.hbm [shape: s32[2,1,32,128], index: 2, kind: input, shape index: {}]
  %s3 = inlined_call_operand.hbm [shape: f32[2,32,128], index: 3, kind: output, shape index: {}]
  %s4 = sld [smem:[#allocation0]]
  $region53: #{tpu_custom_call.1} parent=0
    _
  %s6 = ssub.s32 1, %s4
  %s7 = scalar_select 0, %s6, %s4
  %9 = dma.hbm_to_smem %s0, 16, [#allocation3], [#allocation2]
  %10 = dma.done [#allocation2], 16
  %11 = sfence
  $region1: #{tpu_custom_call.1} parent=0
    #allocation4 [shape = 'u8[131072]{0}', space=vmem, size = 0x20000, scoped, tag = 'input window, operand 1']
    #allocation5 [shape = 's32[2]{0}', space=sflag, size = 0x8, scoped, tag = 'scoped memory for tpu_custom_call.1']
    #allocation6 [shape = 's32[2]{0}', space=sflag, size = 0x8, scoped, tag = 'scoped memory for tpu_custom_call.1']
    #allocation7 [shape = 'u8[32768]{0}', space=vmem, size = 0x8000, scoped, tag = 'input window, operand 2']
    #allocation8 [shape = 's32[2]{0}', space=sflag, size = 0x8, scoped, tag = 'scoped memory for tpu_custom_call.1']
    #allocation9 [shape = 'u8[32768]{0}', space=vmem, size = 0x8000, scoped, tag = 'output window, operand 0']
    %12 = vsyncpa [#allocation5], 0
    %s13 = scalar_lea.sflag [#allocation5], 1
    %14 = vsyncpa %s13, 0
    %15 = vsyncpa [#allocation8], 0
    %s16 = scalar_lea.sflag [#allocation8], 1
    %17 = vsyncpa %s16, 0
    %18 = vsyncpa [#allocation6], 0
    %s19 = scalar_lea.sflag [#allocation6], 1
    %20 = vsyncpa %s19, 0
    loop: start=0, step=1, limit=4
    $region2: #{tpu_custom_call.1} parent=1 // loop_pre_header
      _
    $region3: #{tpu_custom_call.1} parent=1 // loop_header
      %s22 = sphi 0, %s26
      %p23 = scmp.ge.s32.totalorder %s22, 4
      %s29 = sphi 0, %s41
      %s30 = sphi 0, %s37
      %s31 = sphi 0, %s29
      %s32 = sphi 0, %s30
      %s33 = sphi 0, %s31
      %s34 = sphi 0, %s32
      %s46 = sphi 0, %s48
      %s49 = sphi 0, %s46
      %s50 = sphi 0, %s49
      %s66 = sphi 0, %s50
      %s74 = sphi 0, %s76
      %s77 = sphi 0, %s74
      %s78 = sphi 0, %s77
      %s94 = sphi 0, %s78
      %s100 = sphi 0, %s102
      %s103 = sphi 0, %s100
      %s104 = sphi 0, %s103
      %s120 = sphi 0, %s104
    $region4: #{tpu_custom_call.1} parent=1 // loop_header_branch
      %25 = sbr.rel (%p23) target = $region8
    $region5: #{tpu_custom_call.1} parent=1 // loop_body
      %s27 = ssub.s32 %s22, 1
      %s28 = ssub.s32 %s22, 2
      %s35 = sadd.s32 1, %s30
      %p36 = scmp.ge.s32.totalorder %s35, 1
      %s37 = scalar_select %p36, 0, %s35
      %s38 = sadd.s32 1, %s29
      %s39 = scalar_select %p36, %s38, %s29
      %p40 = scmp.ge.s32.totalorder %s39, 2
      %s41 = scalar_select %p40, 0, %s39
      %s42 = ssub.s32 %s29, %s41
      %s43 = ssub.s32 %s30, %s37
      %s44 = sor.u32 %s42, %s43
      %p45 = scmp.eq.s32.totalorder %s44, 0
      %s47 = sadd.s32 %s46, 1
      %s48 = scalar_select %p45, %s46, %s47
      %p51 = pneg %p45
      %p52 = scmp.eq.s32.totalorder %s22, 1
      %p53 = por %p51, %p52
      %p54 = scmp.ne.s32.totalorder %s46, %s49
      %p55 = scmp.eq.s32.totalorder %s22, 0
      %p56 = por %p54, %p55
      %p57 = scmp.ne.s32.totalorder %s46, %s49
      %p58 = scmp.eq.s32.totalorder %s27, 1
      %p59 = por %p57, %p58
      %p60 = scmp.ne.s32.totalorder %s49, %s50
      %p61 = scmp.eq.s32.totalorder %s27, 0
      %p62 = por %p60, %p61
      %p63 = scmp.ne.s32.totalorder %s49, %s50
      %p64 = scmp.eq.s32.totalorder %s28, 1
      %p65 = por %p63, %p64
      %p67 = scmp.ne.s32.totalorder %s50, %s66
      %p68 = scmp.eq.s32.totalorder %s28, 0
      %p69 = por %p67, %p68
      %s70 = ssub.s32 %s29, %s41
      %s71 = ssub.s32 %s30, %s37
      %s72 = sor.u32 %s70, %s71
      %p73 = scmp.eq.s32.totalorder %s72, 0
      %s75 = sadd.s32 %s74, 1
      %s76 = scalar_select %p73, %s74, %s75
      %p79 = pneg %p73
      %p80 = scmp.eq.s32.totalorder %s22, 1
      %p81 = por %p79, %p80
      %p82 = scmp.ne.s32.totalorder %s74, %s77
      %p83 = scmp.eq.s32.totalorder %s22, 0
      %p84 = por %p82, %p83
      %p85 = scmp.ne.s32.totalorder %s74, %s77
      %p86 = scmp.eq.s32.totalorder %s27, 1
      %p87 = por %p85, %p86
      %p88 = scmp.ne.s32.totalorder %s77, %s78
      %p89 = scmp.eq.s32.totalorder %s27, 0
      %p90 = por %p88, %p89
      %p91 = scmp.ne.s32.totalorder %s77, %s78
      %p92 = scmp.eq.s32.totalorder %s28, 1
      %p93 = por %p91, %p92
      %p95 = scmp.ne.s32.totalorder %s78, %s94
      %p96 = scmp.eq.s32.totalorder %s28, 0
      %p97 = por %p95, %p96
      %s98 = ssub.s32 %s29, %s41
      %p99 = scmp.eq.s32.totalorder %s98, 0
      %s101 = sadd.s32 %s100, 1
      %s102 = scalar_select %p99, %s100, %s101
      %p105 = pneg %p99
      %p106 = scmp.eq.s32.totalorder %s22, 1
      %p107 = por %p105, %p106
      %p108 = scmp.ne.s32.totalorder %s100, %s103
      %p109 = scmp.eq.s32.totalorder %s22, 0
      %p110 = por %p108, %p109
      %p111 = scmp.ne.s32.totalorder %s100, %s103
      %p112 = scmp.eq.s32.totalorder %s27, 1
      %p113 = por %p111, %p112
      %p114 = scmp.ne.s32.totalorder %s103, %s104
      %p115 = scmp.eq.s32.totalorder %s27, 0
      %p116 = por %p114, %p115
      %p117 = scmp.ne.s32.totalorder %s103, %s104
      %p118 = scmp.eq.s32.totalorder %s28, 1
      %p119 = por %p117, %p118
      %p121 = scmp.ne.s32.totalorder %s104, %s120
      %p122 = scmp.eq.s32.totalorder %s28, 0
      %p123 = por %p121, %p122
      %p124 = scmp.le.s32.totalorder 1, %s22
      %p125 = scmp.lt.s32.totalorder %s22, 3
      %p126 = pnand %p124, %p125
      %p127 = pneg %p126
      // Predicated region
      $region9: #{tpu_custom_call.1} parent=5 // pred_check
        _
      $region10: #{tpu_custom_call.1} parent=5 // pred_check_branch
        %129 = sbr.rel (%p126) target = $region12
      $region11: #{tpu_custom_call.1} parent=5 // pred_region
        %s130 = ssub.s32 %s22, 1
      $region12: #{tpu_custom_call.1} parent=5 // pred_fallthru
        _
      %p131 = scmp.lt.s32.totalorder %s22, 2
      // Predicated region
      $region13: #{tpu_custom_call.1} parent=5 // pred_check
        %p132 = pneg %p131
      $region14: #{tpu_custom_call.1} parent=5 // pred_check_branch
        %134 = sbr.rel (%p132) target = $region16
      $region15: #{tpu_custom_call.1} parent=5 // pred_region
        // Predicated region
        $region17: #{tpu_custom_call.1} parent=15 // pred_check
          %p135 = pneg %p56
        $region18: #{tpu_custom_call.1} parent=15 // pred_check_branch
          %137 = sbr.rel (%p135) target = $region20
        $region19: #{tpu_custom_call.1} parent=15 // pred_region
          %s138 = sand.u32 %s46, 1
          %s139 = scalar_lea.sflag [#allocation5], %s138
          %s140 = sand.u32 %s46, 1
          %s141 = smul.addr %s140, 128
          %s142 = scalar_lea.vmem [#allocation4], %s141
          %s143 = smul.u32 4, %s30
          %s145 = ssub.s32 2048, 2048
          %146 = vsyncadd %s139, %s145
          %s147 = smul.addr %s29, 16
          %s148 = sadd.s32 %s143, %s147
          %s149 = smul.addr %s148, 128
          %s150 = scalar_lea.hbm %s1, %s149
          %s151 = sshll.u32 %s142, 4
          %s152 = int_to_ptr.vmem [resolvable:$true] %s151
          %157 = dma.hbm_to_vmem [thread:$0]  %s150, 2048, %s152, %s139, 128, 128, 8
        $region20: #{tpu_custom_call.1} parent=15 // pred_fallthru
          _
        // Predicated region
        $region21: #{tpu_custom_call.1} parent=15 // pred_check
          %p158 = pneg %p84
        $region22: #{tpu_custom_call.1} parent=15 // pred_check_branch
          %160 = sbr.rel (%p158) target = $region24
        $region23: #{tpu_custom_call.1} parent=15 // pred_region
          %s161 = sand.u32 %s74, 1
          %s162 = scalar_lea.sflag [#allocation8], %s161
          %s163 = sand.u32 %s74, 1
          %s164 = smul.addr %s163, 32
          %s165 = scalar_lea.vmem [#allocation7], %s164
          %s166 = smul.u32 4, %s30
          %s168 = ssub.s32 512, 512
          %169 = vsyncadd %s162, %s168
          %s170 = smul.addr %s29, 4
          %s171 = sadd.s32 %s166, %s170
          %s172 = smul.addr %s171, 128
          %s173 = scalar_lea.hbm %s2, %s172
          %s174 = sshll.u32 %s165, 4
          %s175 = int_to_ptr.vmem [resolvable:$true] %s174
          %180 = dma.hbm_to_vmem [thread:$0]  %s173, 512, %s175, %s162, 128, 128, 8
        $region24: #{tpu_custom_call.1} parent=15 // pred_fallthru
          _
      $region16: #{tpu_custom_call.1} parent=5 // pred_fallthru
        _
      %p181 = scmp.le.s32.totalorder 1, %s22
      %p182 = scmp.lt.s32.totalorder %s22, 3
      %p183 = pnand %p181, %p182
      %p184 = pneg %p183
      // Predicated region
      $region25: #{tpu_custom_call.1} parent=5 // pred_check
        _
      $region26: #{tpu_custom_call.1} parent=5 // pred_check_branch
        %186 = sbr.rel (%p183) target = $region28
      $region27: #{tpu_custom_call.1} parent=5 // pred_region
        %s187 = ssub.s32 %s22, 1
        %s188 = sand.u32 %s49, 1
        %s189 = scalar_lea.sflag [#allocation5], %s188
        %s190 = sand.u32 %s49, 1
        %s191 = smul.addr %s190, 128
        %s192 = scalar_lea.vmem [#allocation4], %s191
        // Predicated region
        $region29: #{tpu_custom_call.1} parent=27 // pred_check
          %p193 = pneg %p62
        $region30: #{tpu_custom_call.1} parent=27 // pred_check_branch
          %195 = sbr.rel (%p193) target = $region32
        $region31: #{tpu_custom_call.1} parent=27 // pred_region
          %196 = dma.done %s189, 2048
        $region32: #{tpu_custom_call.1} parent=27 // pred_fallthru
          _
        %s197 = sand.u32 %s77, 1
        %s198 = scalar_lea.sflag [#allocation8], %s197
        %s199 = sand.u32 %s77, 1
        %s200 = smul.addr %s199, 32
        %s201 = scalar_lea.vmem [#allocation7], %s200
        // Predicated region
        $region33: #{tpu_custom_call.1} parent=27 // pred_check
          %p202 = pneg %p90
        $region34: #{tpu_custom_call.1} parent=27 // pred_check_branch
          %204 = sbr.rel (%p202) target = $region36
        $region35: #{tpu_custom_call.1} parent=27 // pred_region
          %205 = dma.done %s198, 512
        $region36: #{tpu_custom_call.1} parent=27 // pred_fallthru
          _
        %s206 = sand.u32 %s49, 1
        %s207 = scalar_lea.sflag [#allocation5], %s206
        %s208 = sand.u32 %s49, 1
        %s209 = smul.addr %s208, 128
        %s210 = scalar_lea.vmem [#allocation4], %s209
        %p211 = pneg %p62
        %p212 = pneg %p59
        %s213 = sand.u32 %s77, 1
        %s214 = scalar_lea.sflag [#allocation8], %s213
        %s215 = sand.u32 %s77, 1
        %s216 = smul.addr %s215, 32
        %s217 = scalar_lea.vmem [#allocation7], %s216
        %p218 = pneg %p90
        %p219 = pneg %p87
        %p220 = pneg %p116
        %p221 = pneg %p113
        %s222 = sand.u32 %s103, 1
        %s223 = scalar_lea.sflag [#allocation6], %s222
        %s224 = sand.u32 %s103, 1
        %s225 = smul.addr %s224, 32
        %s226 = scalar_lea.vmem [#allocation9], %s225
        %s227 = smul.u32 4, %s32
        %s228 = smul.u32 4, %s32
        %p229 = scmp.eq.s32.totalorder %s32, 0
        // Predicated region
        $region37: #{tpu_custom_call.1} parent=27 // pred_check
          %p230 = pneg %p229
        $region38: #{tpu_custom_call.1} parent=27 // pred_check_branch
          %232 = sbr.rel (%p230) target = $region40
        $region39: #{tpu_custom_call.1} parent=27 // pred_region
          %233 = vst [vmem:[%s226] sm:$0xff] 0.0
          %234 = vst [vmem:[%s226 + $0x8] sm:$0xff] 0.0
          %235 = vst [vmem:[%s226 + $0x10] sm:$0xff] 0.0
          %236 = vst [vmem:[%s226 + $0x18] sm:$0xff] 0.0
        $region40: #{tpu_custom_call.1} parent=27 // pred_fallthru
          _
        %v237 = vld [vmem:[%s201] sm:$0xff]
        %v238 = vld [vmem:[%s201 + $0x8] sm:$0xff]
        %v239 = vld [vmem:[%s201 + $0x10] sm:$0xff]
        %v240 = vld [vmem:[%s201 + $0x18] sm:$0xff]
        %v241 = vld [vmem:[%s192] sm:$0xff]
        %v242 = vld [vmem:[%s192 + $0x8] sm:$0xff]
        %v243 = vld [vmem:[%s192 + $0x10] sm:$0xff]
        %v244 = vld [vmem:[%s192 + $0x18] sm:$0xff]
        %s245 = scalar_lea.vmem %s192, 32 [#allocation4]
        %v246 = vld [vmem:[%s245] sm:$0xff]
        %v247 = vld [vmem:[%s245 + $0x8] sm:$0xff]
        %v248 = vld [vmem:[%s245 + $0x10] sm:$0xff]
        %v249 = vld [vmem:[%s245 + $0x18] sm:$0xff]
        %v250 = vmax.f32 %v241, %v246
        %v251 = vmax.f32 %v242, %v247
        %v252 = vmax.f32 %v243, %v248
        %v253 = vmax.f32 %v244, %v249
        %s254 = scalar_lea.vmem %s192, 64 [#allocation4]
        %v255 = vld [vmem:[%s254] sm:$0xff]
        %v256 = vld [vmem:[%s254 + $0x8] sm:$0xff]
        %v257 = vld [vmem:[%s254 + $0x10] sm:$0xff]
        %v258 = vld [vmem:[%s254 + $0x18] sm:$0xff]
        %v259 = vmax.f32 %v250, %v255
        %v260 = vmax.f32 %v251, %v256
        %v261 = vmax.f32 %v252, %v257
        %v262 = vmax.f32 %v253, %v258
        %s263 = scalar_lea.vmem %s192, 96 [#allocation4]
        %v264 = vld [vmem:[%s263] sm:$0xff]
        %v265 = vld [vmem:[%s263 + $0x8] sm:$0xff]
        %v266 = vld [vmem:[%s263 + $0x10] sm:$0xff]
        %v267 = vld [vmem:[%s263 + $0x18] sm:$0xff]
        %v268 = vmax.f32 %v259, %v264
        %v269 = vmax.f32 %v260, %v265
        %v270 = vmax.f32 %v261, %v266
        %v271 = vmax.f32 %v262, %v267
        %v272 = vsub.f32 %v241, %v268
        %v273 = vsub.f32 %v242, %v269
        %v274 = vsub.f32 %v243, %v270
        %v275 = vsub.f32 %v244, %v271
        %v276 = vmul.f32 %v272, 1.442695
        %v277 = vpow.pop %v276
        %v278 = vmul.f32 %v273, 1.442695
        %v279 = vpow.pop %v278
        %v280 = vmul.f32 %v274, 1.442695
        %v281 = vpow.pop %v280
        %v282 = vmul.f32 %v275, 1.442695
        %v283 = vpow.pop %v282
        %v284 = vadd.f32 %v277, 0.0
        %v285 = vadd.f32 %v279, 0.0
        %v286 = vadd.f32 %v281, 0.0
        %v287 = vadd.f32 %v283, 0.0
        %vm288 = vcmp.eq.s32.totalorder %v237, 0
        %vm289 = vcmp.eq.s32.totalorder %v238, 0
        %vm290 = vcmp.eq.s32.totalorder %v239, 0
        %vm291 = vcmp.eq.s32.totalorder %v240, 0
        %v292 = vsel %vm288, %v272, 0.0
        %v293 = vsel %vm289, %v273, 0.0
        %v294 = vsel %vm290, %v274, 0.0
        %v295 = vsel %vm291, %v275, 0.0
        %v296 = vsel %vm288, %v277, 0.0
        %v297 = vsel %vm289, %v279, 0.0
        %v298 = vsel %vm290, %v281, 0.0
        %v299 = vsel %vm291, %v283, 0.0
        %s300 = sld [smem:[#allocation3]]
        %v301 = vstv %s300
        %v302 = vsel %vm288, %v301, 0.0
        %v303 = vsel %vm289, %v301, 0.0
        %v304 = vsel %vm290, %v301, 0.0
        %v305 = vsel %vm291, %v301, 0.0
        %v306 = vsub.f32 %v246, %v268
        %v307 = vsub.f32 %v247, %v269
        %v308 = vsub.f32 %v248, %v270
        %v309 = vsub.f32 %v249, %v271
        %v310 = vmul.f32 %v306, 1.442695
        %v311 = vpow.pop %v310
        %v312 = vmul.f32 %v307, 1.442695
        %v313 = vpow.pop %v312
        %v314 = vmul.f32 %v308, 1.442695
        %v315 = vpow.pop %v314
        %v316 = vmul.f32 %v309, 1.442695
        %v317 = vpow.pop %v316
        %v318 = vadd.f32 %v284, %v311
        %v319 = vadd.f32 %v285, %v313
        %v320 = vadd.f32 %v286, %v315
        %v321 = vadd.f32 %v287, %v317
        %vm322 = vcmp.eq.s32.totalorder %v237, 1
        %vm323 = vcmp.eq.s32.totalorder %v238, 1
        %vm324 = vcmp.eq.s32.totalorder %v239, 1
        %vm325 = vcmp.eq.s32.totalorder %v240, 1
        %v326 = vsel %vm322, %v306, %v292
        %v327 = vsel %vm323, %v307, %v293
        %v328 = vsel %vm324, %v308, %v294
        %v329 = vsel %vm325, %v309, %v295
        %v330 = vsel %vm322, %v311, %v296
        %v331 = vsel %vm323, %v313, %v297
        %v332 = vsel %vm324, %v315, %v298
        %v333 = vsel %vm325, %v317, %v299
        %s334 = sld [smem:[#allocation3 + $0x1]]
        %v335 = vstv %s334
        %v336 = vsel %vm322, %v335, %v302
        %v337 = vsel %vm323, %v335, %v303
        %v338 = vsel %vm324, %v335, %v304
        %v339 = vsel %vm325, %v335, %v305
        %v340 = vsub.f32 %v255, %v268
        %v341 = vsub.f32 %v256, %v269
        %v342 = vsub.f32 %v257, %v270
        %v343 = vsub.f32 %v258, %v271
        %v344 = vmul.f32 %v340, 1.442695
        %v345 = vpow.pop %v344
        %v346 = vmul.f32 %v341, 1.442695
        %v347 = vpow.pop %v346
        %v348 = vmul.f32 %v342, 1.442695
        %v349 = vpow.pop %v348
        %v350 = vmul.f32 %v343, 1.442695
        %v351 = vpow.pop %v350
        %v352 = vadd.f32 %v318, %v345
        %v353 = vadd.f32 %v319, %v347
        %v354 = vadd.f32 %v320, %v349
        %v355 = vadd.f32 %v321, %v351
        %vm356 = vcmp.eq.s32.totalorder %v237, 2
        %vm357 = vcmp.eq.s32.totalorder %v238, 2
        %vm358 = vcmp.eq.s32.totalorder %v239, 2
        %vm359 = vcmp.eq.s32.totalorder %v240, 2
        %v360 = vsel %vm356, %v340, %v326
        %v361 = vsel %vm357, %v341, %v327
        %v362 = vsel %vm358, %v342, %v328
        %v363 = vsel %vm359, %v343, %v329
        %v364 = vsel %vm356, %v345, %v330
        %v365 = vsel %vm357, %v347, %v331
        %v366 = vsel %vm358, %v349, %v332
        %v367 = vsel %vm359, %v351, %v333
        %s368 = sld [smem:[#allocation3 + $0x2]]
        %v369 = vstv %s368
        %v370 = vsel %vm356, %v369, %v336
        %v371 = vsel %vm357, %v369, %v337
        %v372 = vsel %vm358, %v369, %v338
        %v373 = vsel %vm359, %v369, %v339
        %v374 = vsub.f32 %v264, %v268
        %v375 = vsub.f32 %v265, %v269
        %v376 = vsub.f32 %v266, %v270
        %v377 = vsub.f32 %v267, %v271
        %v378 = vmul.f32 %v374, 1.442695
        %v379 = vpow.pop %v378
        %v380 = vmul.f32 %v375, 1.442695
        %v381 = vpow.pop %v380
        %v382 = vmul.f32 %v376, 1.442695
        %v383 = vpow.pop %v382
        %v384 = vmul.f32 %v377, 1.442695
        %v385 = vpow.pop %v384
        %v386 = vadd.f32 %v352, %v379
        %v387 = vadd.f32 %v353, %v381
        %v388 = vadd.f32 %v354, %v383
        %v389 = vadd.f32 %v355, %v385
        %vm390 = vcmp.eq.s32.totalorder %v237, 3
        %vm391 = vcmp.eq.s32.totalorder %v238, 3
        %vm392 = vcmp.eq.s32.totalorder %v239, 3
        %vm393 = vcmp.eq.s32.totalorder %v240, 3
        %v394 = vsel %vm390, %v374, %v360
        %v395 = vsel %vm391, %v375, %v361
        %v396 = vsel %vm392, %v376, %v362
        %v397 = vsel %vm393, %v377, %v363
        %v398 = vsel %vm390, %v379, %v364
        %v399 = vsel %vm391, %v381, %v365
        %v400 = vsel %vm392, %v383, %v366
        %v401 = vsel %vm393, %v385, %v367
        %s402 = sld [smem:[#allocation3 + $0x3]]
        %v403 = vstv %s402
        %v404 = vsel %vm390, %v403, %v370
        %v405 = vsel %vm391, %v403, %v371
        %v406 = vsel %vm392, %v403, %v372
        %v407 = vsel %vm393, %v403, %v373
        %v408 = vlog2.pop %v386
        %v409 = vmul.f32 %v408, 0.6931472
        %v410 = vlog2.pop %v387
        %v411 = vmul.f32 %v410, 0.6931472
        %v412 = vlog2.pop %v388
        %v413 = vmul.f32 %v412, 0.6931472
        %v414 = vlog2.pop %v389
        %v415 = vmul.f32 %v414, 0.6931472
        %v416 = vsub.f32 %v409, %v394
        %v417 = vsub.f32 %v411, %v395
        %v418 = vsub.f32 %v413, %v396
        %v419 = vsub.f32 %v415, %v397
        %v420 = vmax.f32 %v416, 0.0
        %v421 = vmax.f32 %v417, 0.0
        %v422 = vmax.f32 %v418, 0.0
        %v423 = vmax.f32 %v419, 0.0
        %v424 = vrcp.pop %v386
        %v425 = vrcp.pop %v387
        %v426 = vrcp.pop %v388
        %v427 = vrcp.pop %v389
        %v428 = vmul.f32 %v398, %v424
        %v429 = vmul.f32 %v399, %v425
        %v430 = vmul.f32 %v400, %v426
        %v431 = vmul.f32 %v401, %v427
        %v432 = vsub.f32 1.0, %v428
        %v433 = vsub.f32 1.0, %v429
        %v434 = vsub.f32 1.0, %v430
        %v435 = vsub.f32 1.0, %v431
        %v436 = vmax.f32 %v432, 0.0
        %v437 = vmax.f32 %v433, 0.0
        %v438 = vmax.f32 %v434, 0.0
        %v439 = vmax.f32 %v435, 0.0
        %v440 = vmul.f32 %v436, %v436
        %v441 = vmul.f32 %v437, %v437
        %v442 = vmul.f32 %v438, %v438
        %v443 = vmul.f32 %v439, %v439
        %v444 = vld [vmem:[%s226] sm:$0xff]
        %v445 = vld [vmem:[%s226 + $0x8] sm:$0xff]
        %v446 = vld [vmem:[%s226 + $0x10] sm:$0xff]
        %v447 = vld [vmem:[%s226 + $0x18] sm:$0xff]
        %v448 = vmul.f32 %v404, %v440
        %v449 = vmul.f32 %v405, %v441
        %v450 = vmul.f32 %v406, %v442
        %v451 = vmul.f32 %v407, %v443
        %v452 = vmul.f32 %v448, %v420
        %v453 = vmul.f32 %v449, %v421
        %v454 = vmul.f32 %v450, %v422
        %v455 = vmul.f32 %v451, %v423
        %v456 = vadd.f32 %v444, %v452
        %v457 = vadd.f32 %v445, %v453
        %v458 = vadd.f32 %v446, %v454
        %v459 = vadd.f32 %v447, %v455
        %460 = vst [vmem:[%s226] sm:$0xff] %v456
        %461 = vst [vmem:[%s226 + $0x8] sm:$0xff] %v457
        %462 = vst [vmem:[%s226 + $0x10] sm:$0xff] %v458
        %463 = vst [vmem:[%s226 + $0x18] sm:$0xff] %v459
        %s464 = sand.u32 %s103, 1
        %s465 = scalar_lea.sflag [#allocation6], %s464
        %s466 = sand.u32 %s103, 1
        %s467 = smul.addr %s466, 32
        %s468 = scalar_lea.vmem [#allocation9], %s467
        // Predicated region
        $region41: #{tpu_custom_call.1} parent=27 // pred_check
          %p469 = pneg %p113
        $region42: #{tpu_custom_call.1} parent=27 // pred_check_branch
          %471 = sbr.rel (%p469) target = $region44
        $region43: #{tpu_custom_call.1} parent=27 // pred_region
          %s473 = ssub.s32 512, 512
          %474 = vsyncadd %s465, %s473
          %s475 = smul.addr %s31, 4
          %s476 = smul.addr %s475, 128
          %s477 = scalar_lea.hbm %s3, %s476
          %s478 = sshll.u32 %s468, 4
          %s479 = int_to_ptr.vmem [resolvable:$true] %s478
          %484 = dma.vmem_to_hbm [thread:$0]  %s479, 512, %s477, %s465, 128, 128, 8
        $region44: #{tpu_custom_call.1} parent=27 // pred_fallthru
          _
      $region28: #{tpu_custom_call.1} parent=5 // pred_fallthru
        _
      %p485 = scmp.le.s32.totalorder 2, %s22
      // Predicated region
      $region45: #{tpu_custom_call.1} parent=5 // pred_check
        %p486 = pneg %p485
      $region46: #{tpu_custom_call.1} parent=5 // pred_check_branch
        %488 = sbr.rel (%p486) target = $region48
      $region47: #{tpu_custom_call.1} parent=5 // pred_region
        %s489 = ssub.s32 %s22, 2
        // Predicated region
        $region49: #{tpu_custom_call.1} parent=47 // pred_check
          %p490 = pneg %p119
        $region50: #{tpu_custom_call.1} parent=47 // pred_check_branch
          %492 = sbr.rel (%p490) target = $region52
        $region51: #{tpu_custom_call.1} parent=47 // pred_region
          %s493 = sand.u32 %s104, 1
          %s494 = scalar_lea.sflag [#allocation6], %s493
          %s495 = sand.u32 %s104, 1
          %s496 = smul.addr %s495, 32
          %s497 = scalar_lea.vmem [#allocation9], %s496
          %498 = dma.done %s494, 512
        $region52: #{tpu_custom_call.1} parent=47 // pred_fallthru
          _
      $region48: #{tpu_custom_call.1} parent=5 // pred_fallthru
        _
    $region6: #{tpu_custom_call.1} parent=1 // loop_footer
      %s26 = sadd.s32 1, %s22
    $region7: #{tpu_custom_call.1} parent=1 // loop_footer_branch
      %21 = sbr.rel target = $region3
    $region8: #{tpu_custom_call.1} parent=1 // loop_exit
      _
    %499 = vsyncpa [#allocation5], 1
    %s500 = scalar_lea.sflag [#allocation5], 1
    %501 = vsyncpa %s500, 1
    %502 = vsyncpa [#allocation8], 1
    %s503 = scalar_lea.sflag [#allocation8], 1
    %504 = vsyncpa %s503, 1
    %505 = vsyncpa [#allocation6], 1
    %s506 = scalar_lea.sflag [#allocation6], 1
    %507 = vsyncpa %s506, 1

</llo_original>
